<compile_context>
chip_gen: v5e
topology: v5e:2x2
jax: 0.10.0
libtpu: 0.0.40
codegen_flags: <defaults>
</compile_context>

<pallas_src>
import functools
import math

import jax
import jax.numpy as jnp
from jax.experimental import pallas as pl
from jax.experimental.pallas import tpu as pltpu


# ---------------------------------------------------------------------------
# small helpers
# ---------------------------------------------------------------------------

def _round_up(x, m):
    return (x + m - 1) // m * m


def _block_and_pad(dim, cap):
    """Pick (block, padded_dim) for one axis.

    If the dim fits under `cap`, use the full dim as the block (full-extent
    blocks are always legal).  Otherwise use `cap` (a multiple of 8/128) and
    pad the dim to a multiple of it so every block is completely full.
    """
    if dim <= cap:
        return dim, dim
    return cap, _round_up(dim, cap)


def _pad2d(x, rows, cols):
    r, c = x.shape
    if r == rows and c == cols:
        return x
    return jnp.pad(x, ((0, rows - r), (0, cols - c)))


_SQRT_HALF = 0.7071067811865476


def _erf(z):
    # Abramowitz & Stegun 7.1.26 rational approximation, |err| <= 1.5e-7.
    # (Used instead of lax.erf so the kernel lowers on Mosaic unconditionally.)
    a1, a2, a3, a4, a5 = (0.254829592, -0.284496736, 1.421413741,
                          -1.453152027, 1.061405429)
    p = 0.3275911
    sgn = jnp.where(z >= 0.0, 1.0, -1.0)
    za = jnp.abs(z)
    t = 1.0 / (1.0 + p * za)
    poly = ((((a5 * t + a4) * t + a3) * t + a2) * t + a1) * t
    return sgn * (1.0 - poly * jnp.exp(-za * za))


def _gelu_exact(x):
    # erf-based GELU, matching torch.nn.GELU() (default, non-approximate).
    return 0.5 * x * (1.0 + _erf(x * _SQRT_HALF))


# ---------------------------------------------------------------------------
# LayerNorm kernel
# ---------------------------------------------------------------------------

def _layernorm_kernel(x_ref, g_ref, b_ref, o_ref, *, eps):
    x = x_ref[...]                                       # (bm, E)
    mean = jnp.mean(x, axis=-1, keepdims=True)
    xc = x - mean
    var = jnp.mean(xc * xc, axis=-1, keepdims=True)      # biased, like PyTorch
    inv = jax.lax.rsqrt(var + eps)
    o_ref[...] = ((xc * inv) * g_ref[...] + b_ref[...]).astype(o_ref.dtype)


def pallas_layernorm(x, gamma, beta, *, eps=1e-5, block_rows=512):
    """x: (N, E); gamma/beta: (1, E)."""
    n, e = x.shape
    bm, n_pad = _block_and_pad(n, block_rows)
    xp = _pad2d(x, n_pad, e)
    out = pl.pallas_call(
        functools.partial(_layernorm_kernel, eps=eps),
        out_shape=jax.ShapeDtypeStruct((n_pad, e), x.dtype),
        grid_spec=pltpu.PrefetchScalarGridSpec(
            num_scalar_prefetch=0,
            grid=(n_pad // bm,),
            in_specs=[
                pl.BlockSpec((bm, e), lambda i: (i, 0)),
                pl.BlockSpec((1, e), lambda i: (0, 0)),
                pl.BlockSpec((1, e), lambda i: (0, 0)),
            ],
            out_specs=pl.BlockSpec((bm, e), lambda i: (i, 0)),
        ),
        compiler_params=pltpu.CompilerParams(
            dimension_semantics=("parallel",)),
    )(xp, gamma, beta)
    return out[:n] if n_pad != n else out


# ---------------------------------------------------------------------------
# Linear (matmul + bias) kernel, with fused GELU / re_zero-scale + residual
# ---------------------------------------------------------------------------

def _linear_kernel(x_ref, w_ref, b_ref, o_ref, acc_ref, *, activation):
    k = pl.program_id(2)

    @pl.when(k == 0)
    def _():
        acc_ref[...] = jnp.zeros_like(acc_ref)

    acc_ref[...] += jnp.dot(x_ref[...], w_ref[...],
                            preferred_element_type=jnp.float32)

    @pl.when(k == pl.num_programs(2) - 1)
    def _():
        y = acc_ref[...] + b_ref[...]
        if activation == "gelu":
            y = _gelu_exact(y)
        o_ref[...] = y.astype(o_ref.dtype)


def _linear_residual_kernel(x_ref, w_ref, b_ref, res_ref, scale_ref,
                            o_ref, acc_ref, *, activation):
    k = pl.program_id(2)

    @pl.when(k == 0)
    def _():
        acc_ref[...] = jnp.zeros_like(acc_ref)

    acc_ref[...] += jnp.dot(x_ref[...], w_ref[...],
                            preferred_element_type=jnp.float32)

    @pl.when(k == pl.num_programs(2) - 1)
    def _():
        y = acc_ref[...] + b_ref[...]
        if activation == "gelu":
            y = _gelu_exact(y)
        # re_zero scale + residual add fused into the matmul epilogue.
        o_ref[...] = (res_ref[...] + scale_ref[0, 0] * y).astype(o_ref.dtype)


def pallas_linear(x, w, b, *, activation=None, residual=None, scale=None,
                  bm_cap=256, bn_cap=256, bk_cap=512):
    """y = act(x @ w + b); optionally y = residual + scale * y.

    x: (M, K); w: (K, N) (already transposed from PyTorch (out,in)); b: (N,).
    """
    m, k = x.shape
    kw, n = w.shape
    assert k == kw
    bm, m_pad = _block_and_pad(m, bm_cap)
    bn, n_pad = _block_and_pad(n, bn_cap)
    bk, k_pad = _block_and_pad(k, bk_cap)

    xp = _pad2d(x, m_pad, k_pad)
    wp = _pad2d(w, k_pad, n_pad)
    bp = _pad2d(b.reshape(1, n), 1, n_pad)

    x_spec = pl.BlockSpec((bm, bk), lambda i, j, kk: (i, kk))
    w_spec = pl.BlockSpec((bk, bn), lambda i, j, kk: (kk, j))
    b_spec = pl.BlockSpec((1, bn), lambda i, j, kk: (0, j))
    o_spec = pl.BlockSpec((bm, bn), lambda i, j, kk: (i, j))

    if residual is None:
        kernel = functools.partial(_linear_kernel, activation=activation)
        in_specs = [x_spec, w_spec, b_spec]
        args = (xp, wp, bp)
    else:
        rp = _pad2d(residual, m_pad, n_pad)
        sp = jnp.asarray(scale, dtype=x.dtype).reshape(1, 1)
        kernel = functools.partial(_linear_residual_kernel, activation=activation)
        in_specs = [x_spec, w_spec, b_spec, o_spec,
                    pl.BlockSpec(memory_space=pltpu.MemorySpace.SMEM)]
        args = (xp, wp, bp, rp, sp)

    out = pl.pallas_call(
        kernel,
        out_shape=jax.ShapeDtypeStruct((m_pad, n_pad), x.dtype),
        grid_spec=pltpu.PrefetchScalarGridSpec(
            num_scalar_prefetch=0,
            grid=(m_pad // bm, n_pad // bn, k_pad // bk),
            in_specs=in_specs,
            out_specs=o_spec,
            scratch_shapes=[pltpu.VMEM((bm, bn), jnp.float32)],
        ),
        compiler_params=pltpu.CompilerParams(
            dimension_semantics=("parallel", "parallel", "arbitrary")),
    )(*args)

    if (m_pad, n_pad) != (m, n):
        out = out[:m, :n]
    return out


# ---------------------------------------------------------------------------
# Self-attention kernel (all heads per batch, key-padding bias, softmax)
# ---------------------------------------------------------------------------

def _attention_kernel(q_ref, k_ref, v_ref, bias_ref, o_ref):
    dh = q_ref.shape[-1]
    q = q_ref[0]                                          # (H, S, Dh)
    k = k_ref[0]
    v = v_ref[0]
    logits = jnp.einsum("hqd,hkd->hqk", q, k,
                        preferred_element_type=jnp.float32)
    logits = logits / math.sqrt(dh)
    logits = logits + bias_ref[...]                       # (1,1,S) broadcast over keys
    m = jnp.max(logits, axis=-1, keepdims=True)
    e = jnp.exp(logits - m)
    p = e / jnp.sum(e, axis=-1, keepdims=True)
    out = jnp.einsum("hqk,hkd->hqd", p.astype(v.dtype), v,
                     preferred_element_type=jnp.float32)
    o_ref[...] = out[None].astype(o_ref.dtype)


def pallas_attention(q, k, v, key_bias):
    """q, k, v: (B, H, S, Dh); key_bias: (B, 1, S). Returns (B, H, S, Dh)."""
    b, h, s, dh = q.shape
    qkv_spec = pl.BlockSpec((1, h, s, dh), lambda i: (i, 0, 0, 0))
    # TODO(synk): for long sequences this holds the full (H,S,S) logits per batch;
    # a flash-style key-tiled variant would be used instead.
    return pl.pallas_call(
        _attention_kernel,
        out_shape=jax.ShapeDtypeStruct((b, h, s, dh), q.dtype),
        grid_spec=pltpu.PrefetchScalarGridSpec(
            num_scalar_prefetch=0,
            grid=(b,),
            in_specs=[qkv_spec, qkv_spec, qkv_spec,
                      pl.BlockSpec((1, 1, s), lambda i: (i, 0, 0))],
            out_specs=qkv_spec,
        ),
        compiler_params=pltpu.CompilerParams(
            dimension_semantics=("parallel",)),
    )(q, k, v, key_bias)


# ---------------------------------------------------------------------------
# Padding bias kernel: (inputs == 0).all(-1) * -1e9
# ---------------------------------------------------------------------------

def _padding_bias_kernel(x_ref, o_ref):
    x = x_ref[...]                                          # (B, S, E)
    absmax = jnp.max(jnp.abs(x), axis=-1, keepdims=True)    # (B, S, 1)
    o_ref[...] = jnp.where(absmax == 0.0, -1e9, 0.0).astype(o_ref.dtype)


def pallas_padding_bias(inputs):
    b, s, e = inputs.shape
    out = pl.pallas_call(
        _padding_bias_kernel,
        out_shape=jax.ShapeDtypeStruct((b, s, 1), inputs.dtype),
        grid_spec=pltpu.PrefetchScalarGridSpec(
            num_scalar_prefetch=0,
            grid=(1,),
            in_specs=[pl.BlockSpec((b, s, e), lambda i: (0, 0, 0))],
            out_specs=pl.BlockSpec((b, s, 1), lambda i: (0, 0, 0)),
        ),
    )(inputs)
    return out.reshape(b, 1, s)


# ---------------------------------------------------------------------------
# Full TransformerEncoder forward (Pallas kernels + thin JAX glue)
# ---------------------------------------------------------------------------

def transformer_encoder_forward(inputs, params, *, num_heads, layer_norm=True,
                                re_zero=True):
    b, s, e = inputs.shape
    h = num_heads
    dh = e // h
    n = b * s

    key_bias = pallas_padding_bias(inputs)                  # (B, 1, S)
    gamma = params["ln_gamma"]
    beta = params["ln_beta"]
    scale = (params["context_scale"] if re_zero
             else jnp.ones((1, 1), inputs.dtype))

    x = inputs.reshape(n, e)

    def maybe_ln(t):
        return pallas_layernorm(t, gamma, beta) if layer_norm else t

    def to_heads(t):
        return t.reshape(b, s, h, dh).transpose(0, 2, 1, 3)  # (B,H,S,Dh)

    for lyr in params["layers"]:
        # ---- self-attention block ---------------------------------------
        res = maybe_ln(x)
        qkv = pallas_linear(res, lyr["w_qkv"], lyr["b_qkv"])  # fused QKV (N, 3E)
        q, kk, v = jnp.split(qkv, 3, axis=-1)
        vals = pallas_attention(to_heads(q), to_heads(kk), to_heads(v), key_bias)
        vals = vals.transpose(0, 2, 1, 3).reshape(n, e)
        # o_proj + re_zero scale + residual add fused into one kernel.
        # TODO(synk): dropout is identity in eval/inference mode; not applied.
        x = pallas_linear(vals, lyr["w_o"], lyr["b_o"], residual=x, scale=scale)

        # ---- feed-forward block -------------------------------------------
        res = maybe_ln(x)
        f = pallas_linear(res, lyr["w_fc1"], lyr["b_fc1"], activation="gelu")
        x = pallas_linear(f, lyr["w_fc2"], lyr["b_fc2"], residual=x, scale=scale)

    out = maybe_ln(x)
    return out.reshape(b, s, e)


# ---------------------------------------------------------------------------
# Parameter init (PyTorch conventions: kaiming_normal_(fan_out, relu), tiny bias)
# ---------------------------------------------------------------------------

def init_params(key, *, hidden_size, fc_size, num_layers):
    e, f = hidden_size, fc_size
    params = {
        "ln_gamma": jnp.ones((1, e), jnp.float32),
        "ln_beta": jnp.zeros((1, e), jnp.float32),
        # PyTorch re_zero init is 0.0 (which zeroes every residual branch);
        # use a nonzero value so the attention/FFN path is actually exercised.
        "context_scale": jnp.full((1, 1), 0.5, jnp.float32),
        "layers": [],
    }

    def kaiming(k, fan_in, fan_out):
        # PyTorch weight is (out, in); kaiming fan_out => std = sqrt(2/out).
        # Stored transposed, as (in, out), so the kernels compute x @ W.
        std = math.sqrt(2.0 / fan_out)
        return jax.random.normal(k, (fan_in, fan_out), jnp.float32) * std

    def small_bias(k, nn_):
        return jax.random.normal(k, (nn_,), jnp.float32) * 1e-6

    for _ in range(num_layers):
        key, *ks = jax.random.split(key, 13)
        wq, wk, wv = kaiming(ks[0], e, e), kaiming(ks[1], e, e), kaiming(ks[2], e, e)
        params["layers"].append({
            "w_qkv": jnp.concatenate([wq, wk, wv], axis=1),          # (E, 3E)
            "b_qkv": jnp.concatenate([small_bias(ks[3], e),
                                      small_bias(ks[4], e),
                                      small_bias(ks[5], e)]),
            "w_o": kaiming(ks[6], e, e),
            "b_o": small_bias(ks[7], e),
            "w_fc1": kaiming(ks[8], e, f),
            "b_fc1": small_bias(ks[9], f),
            "w_fc2": kaiming(ks[10], f, e),
            "b_fc2": small_bias(ks[11], e),
        })
    return params


# ---------------------------------------------------------------------------
# Pure-JAX reference (mirrors the PyTorch forward exactly)
# ---------------------------------------------------------------------------

def reference_forward(inputs, params, *, num_heads, layer_norm=True,
                      re_zero=True, eps=1e-5):
    b, s, e = inputs.shape
    h = num_heads
    dh = e // h
    pad = jnp.all(inputs == 0.0, axis=-1).astype(jnp.float32)      # (B, S)
    bias = (pad * -1e9)[:, None, None, :]                           # (B,1,1,S)
    g = params["ln_gamma"].reshape(e)
    bb = params["ln_beta"].reshape(e)
    scale = params["context_scale"].reshape(()) if re_zero else 1.0

    def ln(t):
        if not layer_norm:
            return t
        m = jnp.mean(t, axis=-1, keepdims=True)
        v = jnp.mean((t - m) ** 2, axis=-1, keepdims=True)
        return (t - m) * jax.lax.rsqrt(v + eps) * g + bb

    def heads(t):
        return t.reshape(b, s, h, dh).transpose(0, 2, 1, 3)

    x = inputs
    for lyr in params["layers"]:
        r = ln(x)
        qkv = r.reshape(b * s, e) @ lyr["w_qkv"] + lyr["b_qkv"]
        q, k, v = jnp.split(qkv.reshape(b, s, 3 * e), 3, axis=-1)
        q, k, v = heads(q), heads(k), heads(v)
        logits = jnp.einsum("bhqd,bhkd->bhqk", q, k) / math.sqrt(dh) + bias
        attn = jax.nn.softmax(logits, axis=-1)
        vals = jnp.einsum("bhqk,bhkd->bhqd", attn, v)
        vals = vals.transpose(0, 2, 1, 3).reshape(b, s, e)
        x = x + scale * (vals @ lyr["w_o"] + lyr["b_o"])
        r = ln(x)
        f = jax.nn.gelu(r @ lyr["w_fc1"] + lyr["b_fc1"], approximate=False)
        f = f @ lyr["w_fc2"] + lyr["b_fc2"]
        x = x + scale * f
    return ln(x)


# ---------------------------------------------------------------------------
# demo / self-check
# ---------------------------------------------------------------------------

if __name__ == "__main__":
    hidden_size = 32
    fc_size = 64
    num_heads = 4
    num_layers = 2
    batch, seq = 2, 8

    key = jax.random.PRNGKey(0)
    k_in, k_par = jax.random.split(key)

    inputs = jax.random.normal(k_in, (batch, seq, hidden_size), jnp.float32)
    # Make one position exactly zero so the padding-bias path is exercised.
    inputs = inputs.at[0, seq - 1, :].set(0.0)

    params = init_params(k_par, hidden_size=hidden_size, fc_size=fc_size,
                         num_layers=num_layers)

    out = transformer_encoder_forward(inputs, params, num_heads=num_heads)
    out = jax.block_until_ready(out)

    ref = jax.block_until_ready(
        reference_forward(inputs, params, num_heads=num_heads))

    assert out.shape == (batch, seq, hidden_size), out.shape
    assert bool(jnp.all(jnp.isfinite(out))), "non-finite output"
    max_err = float(jnp.max(jnp.abs(out - ref)))
    assert max_err < 2e-4, f"mismatch vs reference: max abs err {max_err}"

    print("KERNEL_OK")
</pallas_src>

<mosaic_0001>
module attributes {stable_mosaic.version = 11 : i64} {
  func.func @_padding_bias_kernel(%arg0: i32, %arg1: memref<2x8x32xf32, #tpu.memory_space<vmem>>, %arg2: memref<2x8x1xf32, #tpu.memory_space<vmem>>) attributes {dimension_semantics = [#tpu.dimension_semantics<arbitrary>], iteration_bounds = array<i64: 1>, scalar_prefetch = 0 : i64, scratch_operands = 0 : i64, tpu.core_type = #tpu.core_type<tc>, window_params = [{pipeline_mode = #tpu.pipeline_mode<synchronous>, transform_indices = @transform_0, window_bounds = array<i64: 2, 8, 32>}, {pipeline_mode = #tpu.pipeline_mode<synchronous>, transform_indices = @transform_1, window_bounds = array<i64: 2, 8, 1>}]} {
    %c0 = arith.constant 0 : index
    %c0_0 = arith.constant 0 : index
    %c0_1 = arith.constant 0 : index
    %0 = vector.load %arg1[%c0, %c0_0, %c0_1] : memref<2x8x32xf32, #tpu.memory_space<vmem>>, vector<2x8x32xf32>
    %1 = math.absf %0 : vector<2x8x32xf32>
    %cst = arith.constant dense<0xFF800000> : vector<2x8xf32>
    %2 = vector.multi_reduction <maximumf>, %1, %cst [2] : vector<2x8x32xf32> to vector<2x8xf32>
    %3 = vector.shape_cast %2 : vector<2x8xf32> to vector<2x8x1xf32>
    %cst_2 = arith.constant 0.000000e+00 : f32
    %4 = vector.broadcast %cst_2 : f32 to vector<2x8x1xf32>
    %5 = arith.cmpf oeq, %3, %4 : vector<2x8x1xf32>
    %cst_3 = arith.constant -1.000000e+09 : f32
    %cst_4 = arith.constant 0.000000e+00 : f32
    %6 = vector.broadcast %cst_3 : f32 to vector<2x8x1xf32>
    %7 = vector.broadcast %cst_4 : f32 to vector<2x8x1xf32>
    %8 = arith.select %5, %6, %7 : vector<2x8x1xi1>, vector<2x8x1xf32>
    %c0_5 = arith.constant 0 : index
    %c0_6 = arith.constant 0 : index
    %c0_7 = arith.constant 0 : index
    %9 = vector.load %arg2[%c0_5, %c0_6, %c0_7] : memref<2x8x1xf32, #tpu.memory_space<vmem>>, vector<2x8x1xf32>
    tpu.vector_store %arg2[%c0_5, %c0_6, %c0_7], %8 {strides = array<i32>} : memref<2x8x1xf32, #tpu.memory_space<vmem>>, vector<2x8x1xf32>,
    return
  }
  func.func @transform_0(%arg0: i32) -> (i32, i32, i32) {
    %c0_i32 = arith.constant 0 : i32
    %c0_i32_0 = arith.constant 0 : i32
    %c0_i32_1 = arith.constant 0 : i32
    %c0_i32_2 = arith.constant 0 : i32
    return %c0_i32, %c0_i32_0, %c0_i32_1 : i32, i32, i32
  }
  func.func @transform_1(%arg0: i32) -> (i32, i32, i32) {
    %c0_i32 = arith.constant 0 : i32
    %c0_i32_0 = arith.constant 0 : i32
    %c0_i32_1 = arith.constant 0 : i32
    %c0_i32_2 = arith.constant 0 : i32
    return %c0_i32, %c0_i32_0, %c0_i32_1 : i32, i32, i32
  }
}

</mosaic_0001>

<llo_original>
// kernel: tpu_custom_call.1
$region0: #{tpu_custom_call.1}
  #allocation0 [shape = 'u32[]', space=smem, size = 0x4, offset = 0x4, fixed_abs, tag = 'smem constant byte address 0x4 - core index']
  #allocation1 [shape = 'u32[72,128]{1,0:T(1,128)}', space=vmem, size = 0x9000, scoped, tag = 'internal scratch']
  %s0 = inlined_call_operand.hbm [shape: f32[2,8,32], index: 0, kind: input, shape index: {}]
  %s1 = inlined_call_operand.vmem [shape: f32[2,8,1], index: 1, kind: output, shape index: {}]
  %s2 = sld [smem:[#allocation0]]
  $region18: #{tpu_custom_call.1} parent=0
    _
  %s4 = ssub.s32 1, %s2
  %s5 = scalar_select 0, %s4, %s2
  $region1: #{tpu_custom_call.1} parent=0
    #allocation2 [shape = 'u8[8192]{0}', space=vmem, size = 0x2000, scoped, tag = 'input window, operand 0, single buffered']
    #allocation3 [shape = 's32[1]{0}', space=sflag, size = 0x4, scoped, tag = 'scoped memory for tpu_custom_call.1']
    %6 = vsyncpa [#allocation3], 0
    // Predicated region
    $region2: #{tpu_custom_call.1} parent=1 // pred_check
      _
    $region3: #{tpu_custom_call.1} parent=1 // pred_check_branch
      %8 = sbr.rel (0) target = $region5
    $region4: #{tpu_custom_call.1} parent=1 // pred_region
      %10 = vsyncadd [#allocation3], 0
      %s11 = sshll.u32 %s0, 4
      %s12 = int_to_ptr.hbm [resolvable:$true] %s11
      %s13 = sshll.u32 [#allocation2], 4
      %s14 = int_to_ptr.vmem [resolvable:$true] %s13
      %19 = dma.hbm_to_vmem [thread:$0]  %s12, 256, %s14, [#allocation3], 128, 128, 8
    $region5: #{tpu_custom_call.1} parent=1 // pred_fallthru
      _
    // Predicated region
    $region6: #{tpu_custom_call.1} parent=1 // pred_check
      _
    $region7: #{tpu_custom_call.1} parent=1 // pred_check_branch
      %21 = sbr.rel (0) target = $region9
    $region8: #{tpu_custom_call.1} parent=1 // pred_region
      %23 = dma.done [#allocation3], 256
    $region9: #{tpu_custom_call.1} parent=1 // pred_fallthru
      _
    %v24 = vld [vmem:[#allocation2] sm:$0xff]
    %v25 = vld [vmem:[#allocation2 + $0x8] sm:$0xff]
    %v26 = vand.u32 2147483647, %v24
    %v27 = vand.u32 2147483647, %v25
    %vm28 = vcmask 261120
    %v29 = vsel %vm28, %v26, -inf
    %30 = vmax.xlane.f32.xlu0 %v29
    %v31 = vpop.xlane.xlu0 %30
    %v32 = vsel %vm28, %v27, -inf
    %33 = vmax.xlane.f32.xlu0 %v32
    %v34 = vpop.xlane.xlu0 %33
    %vm35 = vcmp.eq.f32.partialorder %v31, 0.0
    %vm36 = vcmp.eq.f32.partialorder %v34, 0.0
    %v37 = vsel %vm35, -1e+09, 0.0
    %v38 = vsel %vm36, -1e+09, 0.0
    %vm39 = vcmask 7168
    %40 = vst.msk [vmem:[%s1] sm:$0xff] %vm39, %v37
    %41 = vst.msk [vmem:[%s1 + $0x8] sm:$0xff] %vm39, %v38
    // Predicated region
    $region10: #{tpu_custom_call.1} parent=1 // pred_check
      _
    $region11: #{tpu_custom_call.1} parent=1 // pred_check_branch
      %43 = sbr.rel (0) target = $region13
    $region12: #{tpu_custom_call.1} parent=1 // pred_region
      _
    $region13: #{tpu_custom_call.1} parent=1 // pred_fallthru
      _
    // Predicated region
    $region14: #{tpu_custom_call.1} parent=1 // pred_check
      _
    $region15: #{tpu_custom_call.1} parent=1 // pred_check_branch
      %45 = sbr.rel (0) target = $region17
    $region16: #{tpu_custom_call.1} parent=1 // pred_region
      _
    $region17: #{tpu_custom_call.1} parent=1 // pred_fallthru
      _
    %46 = vsyncpa [#allocation3], 1

</llo_original>
